<compile_context>
chip_gen: v5e
topology: v5e:2x2
jax: 0.10.0
libtpu: 0.0.40
codegen_flags: <defaults>
</compile_context>

<pallas_src>
import functools

import jax
import jax.numpy as jnp
import numpy as np
from jax.experimental import pallas as pl
from jax.experimental.pallas import tpu as pltpu


def _banded_weight(w_hwio, W):
    """Fold the K horizontal taps of an HWIO conv weight into banded matrices.

    Returns B of shape (K, W*Cin, W*Cout) with
      B[kh, wi*Cin + ci, wo*Cout + co] = w_hwio[kh, wi - wo + K//2, ci, co]
    (zero where the horizontal tap index falls outside [0, K)), so a row of
    activations of length W*Cin matmul'd with B[kh] yields the contribution of
    vertical tap kh to a full lane-dense output row of length W*Cout.
    """
    K, _, Cin, Cout = w_hwio.shape
    wi = jnp.arange(W)[:, None]           # input width position
    wo = jnp.arange(W)[None, :]           # output width position
    kw = wi - wo + K // 2                 # horizontal tap index
    valid = (kw >= 0) & (kw < K)
    kw_c = jnp.clip(kw, 0, K - 1)
    b = w_hwio[:, kw_c, :, :]                              # (K, Wi, Wo, Cin, Cout)
    b = jnp.where(valid[None, :, :, None, None], b, 0.0)
    b = jnp.transpose(b, (0, 1, 3, 2, 4))                  # (K, Wi, Cin, Wo, Cout)
    return b.reshape(K, W * Cin, W * Cout)


def _shift_matrices(N, H):
    """(2, R, R) row-shift matrices with per-image boundary masking.

    s[0] @ X : row r <- x[r-1]  (zero at each image's first row)   -> pairs with kh=0
    s[1] @ X : row r <- x[r+1]  (zero at each image's last row)    -> pairs with kh=2
    """
    R = N * H
    r = jnp.arange(R)
    same_image = (r[:, None] // H) == (r[None, :] // H)
    s_dn = jnp.where((r[None, :] == r[:, None] - 1) & same_image, 1.0, 0.0)
    s_up = jnp.where((r[None, :] == r[:, None] + 1) & same_image, 1.0, 0.0)
    return jnp.stack([s_dn, s_up]).astype(jnp.float32)


def _repconv_kernel(x_ref, b_ref, s_ref, bias_ref, o_ref, *, compute_dtype):
    """Fused 3x3 same-padded conv: 5 MXU matmuls on lane-dense (R, W*C) rows."""
    x = x_ref[...].astype(compute_dtype)            # (R, W*Cin)
    s_dn = s_ref[0].astype(compute_dtype)           # (R, R)
    s_up = s_ref[1].astype(compute_dtype)

    # Vertical taps: row shifts (with image-boundary zeroing) as tiny matmuls —
    # exact, stays on the MXU, avoids sublane-unaligned slice relayout copies.
    x_dn = jnp.dot(s_dn, x, preferred_element_type=jnp.float32).astype(compute_dtype)
    x_up = jnp.dot(s_up, x, preferred_element_type=jnp.float32).astype(compute_dtype)

    b0 = b_ref[0].astype(compute_dtype)   # kernel row kh=0 pairs with x[r-1]
    b1 = b_ref[1].astype(compute_dtype)   # kh=1 pairs with x[r]
    b2 = b_ref[2].astype(compute_dtype)   # kh=2 pairs with x[r+1]

    acc = jnp.dot(x, b1, preferred_element_type=jnp.float32)
    acc = acc + jnp.dot(x_dn, b0, preferred_element_type=jnp.float32)
    acc = acc + jnp.dot(x_up, b2, preferred_element_type=jnp.float32)
    acc = acc + bias_ref[...]                       # (1, W*Cout) broadcasts
    o_ref[...] = acc.astype(o_ref.dtype)


def repconv_forward(x, weight, bias, *, use_bf16=False):
    """RepConv forward: 3x3 stride-1 pad-1 conv, matching nn.Conv2d(C, C, 3, 1, 1).

    x: (N, C, H, W) float32 (PyTorch NCHW); weight: (Cout, Cin, 3, 3) (OIHW);
    bias: (Cout,).  Returns (N, Cout, H, W) float32.
    """
    N, Cin, H, W = x.shape
    Cout, _, K, _ = weight.shape
    assert K == 3, "RepConv uses a 3x3 kernel"
    R = N * H
    WCi, WCo = W * Cin, W * Cout

    # Lane-dense activation rows: (N, C, H, W) -> (N, H, W, C) -> (N*H, W*C).
    xf = jnp.transpose(x, (0, 2, 3, 1)).reshape(R, WCi)
    # OIHW -> HWIO -> banded (3, W*Cin, W*Cout); bias laid out as one output row.
    bmat = _banded_weight(jnp.transpose(weight, (2, 3, 1, 0)), W)
    shift = _shift_matrices(N, H)
    bias_row = jnp.tile(bias, W).reshape(1, WCo)

    # bf16 MXU operands (f32 accumulation) help on v5e/v6e; off by default to
    # keep the tight f32 tolerance in the self-check.
    compute_dtype = jnp.bfloat16 if use_bf16 else jnp.float32

    flops = 2 * R * WCi * WCo * 3 + 2 * 2 * R * R * WCi
    bytes_accessed = 4 * (R * WCi + 3 * WCi * WCo + 2 * R * R + WCo + R * WCo)

    out_rows = pl.pallas_call(
        functools.partial(_repconv_kernel, compute_dtype=compute_dtype),
        out_shape=jax.ShapeDtypeStruct((R, WCo), jnp.float32),
        grid=(1,),  # fully fused: batch is folded into the matmul M dimension
        in_specs=[
            pl.BlockSpec((R, WCi), lambda i: (0, 0)),
            pl.BlockSpec((3, WCi, WCo), lambda i: (0, 0, 0)),
            pl.BlockSpec((2, R, R), lambda i: (0, 0, 0)),
            pl.BlockSpec((1, WCo), lambda i: (0, 0)),
        ],
        out_specs=pl.BlockSpec((R, WCo), lambda i: (0, 0)),
        compiler_params=pltpu.CompilerParams(
            dimension_semantics=("arbitrary",)),
        cost_estimate=pl.CostEstimate(
            flops=flops, transcendentals=0, bytes_accessed=bytes_accessed),
    )(xf, bmat, shift, bias_row)

    # (N*H, W*Cout) -> NCHW
    return jnp.transpose(out_rows.reshape(N, H, W, Cout), (0, 3, 1, 2))


if __name__ == "__main__":
    # RepConv(n_feats=16) on a (2, 16, 16, 16) NCHW input (W*C = 256 lanes).
    N, C, H, W = 2, 16, 16, 16
    key = jax.random.PRNGKey(0)
    kx, kw, kb = jax.random.split(key, 3)

    x = jax.random.normal(kx, (N, C, H, W), jnp.float32)
    scale = 1.0 / float(np.sqrt(3 * 3 * C))
    weight = jax.random.normal(kw, (C, C, 3, 3), jnp.float32) * scale
    bias = jax.random.normal(kb, (C,), jnp.float32) * 0.05

    fwd = jax.jit(repconv_forward)
    out = jax.block_until_ready(fwd(x, weight, bias))

    # Pure-JAX reference matching nn.Conv2d(C, C, 3, stride=1, padding=1).
    ref = jax.lax.conv_general_dilated(
        x, weight, window_strides=(1, 1), padding=((1, 1), (1, 1)),
        dimension_numbers=("NCHW", "OIHW", "NCHW")) + bias[None, :, None, None]
    ref = jax.block_until_ready(ref)

    np.testing.assert_allclose(np.asarray(out), np.asarray(ref),
                               atol=1e-3, rtol=1e-3)
    print("KERNEL_OK")
</pallas_src>

<mosaic_0001>
module attributes {stable_mosaic.version = 11 : i64} {
  func.func @_repconv_kernel(%arg0: i32, %arg1: memref<32x256xf32, #tpu.memory_space<vmem>>, %arg2: memref<3x256x256xf32, #tpu.memory_space<vmem>>, %arg3: memref<2x32x32xf32, #tpu.memory_space<vmem>>, %arg4: memref<1x256xf32, #tpu.memory_space<vmem>>, %arg5: memref<32x256xf32, #tpu.memory_space<vmem>>) attributes {dimension_semantics = [#tpu.dimension_semantics<arbitrary>], iteration_bounds = array<i64: 1>, scalar_prefetch = 0 : i64, scratch_operands = 0 : i64, tpu.core_type = #tpu.core_type<tc>, window_params = [{pipeline_mode = #tpu.pipeline_mode<synchronous>, transform_indices = @transform_0, window_bounds = array<i64: 32, 256>}, {pipeline_mode = #tpu.pipeline_mode<synchronous>, transform_indices = @transform_1, window_bounds = array<i64: 3, 256, 256>}, {pipeline_mode = #tpu.pipeline_mode<synchronous>, transform_indices = @transform_2, window_bounds = array<i64: 2, 32, 32>}, {pipeline_mode = #tpu.pipeline_mode<synchronous>, transform_indices = @transform_3, window_bounds = array<i64: 1, 256>}, {pipeline_mode = #tpu.pipeline_mode<synchronous>, transform_indices = @transform_4, window_bounds = array<i64: 32, 256>}]} {
    %c0 = arith.constant 0 : index
    %c0_0 = arith.constant 0 : index
    %0 = vector.load %arg1[%c0, %c0_0] : memref<32x256xf32, #tpu.memory_space<vmem>>, vector<32x256xf32>
    %c0_1 = arith.constant 0 : index
    %c0_2 = arith.constant 0 : index
    %c0_3 = arith.constant 0 : index
    %1 = vector.load %arg3[%c0_1, %c0_2, %c0_3] : memref<2x32x32xf32, #tpu.memory_space<vmem>>, vector<1x32x32xf32>
    %2 = vector.shape_cast %1 : vector<1x32x32xf32> to vector<32x32xf32>
    %c1 = arith.constant 1 : index
    %c0_4 = arith.constant 0 : index
    %c0_5 = arith.constant 0 : index
    %3 = vector.load %arg3[%c1, %c0_4, %c0_5] : memref<2x32x32xf32, #tpu.memory_space<vmem>>, vector<1x32x32xf32>
    %4 = vector.shape_cast %3 : vector<1x32x32xf32> to vector<32x32xf32>
    %cst = arith.constant dense<0.000000e+00> : vector<32x256xf32>
    %5 = tpu.matmul %2, %0, %cst {dimension_numbers = #tpu.dot_dimension_numbers<[1], [0], [0], [1], [0, 0, 1, 1], [], []>} : vector<32x32xf32>, vector<32x256xf32>, vector<32x256xf32> -> vector<32x256xf32>
    %cst_6 = arith.constant dense<0.000000e+00> : vector<32x256xf32>
    %6 = tpu.matmul %4, %0, %cst_6 {dimension_numbers = #tpu.dot_dimension_numbers<[1], [0], [0], [1], [0, 0, 1, 1], [], []>} : vector<32x32xf32>, vector<32x256xf32>, vector<32x256xf32> -> vector<32x256xf32>
    %c0_7 = arith.constant 0 : index
    %c0_8 = arith.constant 0 : index
    %c0_9 = arith.constant 0 : index
    %7 = vector.load %arg2[%c0_7, %c0_8, %c0_9] : memref<3x256x256xf32, #tpu.memory_space<vmem>>, vector<1x256x256xf32>
    %8 = vector.shape_cast %7 : vector<1x256x256xf32> to vector<256x256xf32>
    %c1_10 = arith.constant 1 : index
    %c0_11 = arith.constant 0 : index
    %c0_12 = arith.constant 0 : index
    %9 = vector.load %arg2[%c1_10, %c0_11, %c0_12] : memref<3x256x256xf32, #tpu.memory_space<vmem>>, vector<1x256x256xf32>
    %10 = vector.shape_cast %9 : vector<1x256x256xf32> to vector<256x256xf32>
    %c2 = arith.constant 2 : index
    %c0_13 = arith.constant 0 : index
    %c0_14 = arith.constant 0 : index
    %11 = vector.load %arg2[%c2, %c0_13, %c0_14] : memref<3x256x256xf32, #tpu.memory_space<vmem>>, vector<1x256x256xf32>
    %12 = vector.shape_cast %11 : vector<1x256x256xf32> to vector<256x256xf32>
    %cst_15 = arith.constant dense<0.000000e+00> : vector<32x256xf32>
    %13 = tpu.matmul %0, %10, %cst_15 {dimension_numbers = #tpu.dot_dimension_numbers<[1], [0], [0], [1], [0, 0, 1, 1], [], []>} : vector<32x256xf32>, vector<256x256xf32>, vector<32x256xf32> -> vector<32x256xf32>
    %cst_16 = arith.constant dense<0.000000e+00> : vector<32x256xf32>
    %14 = tpu.matmul %5, %8, %cst_16 {dimension_numbers = #tpu.dot_dimension_numbers<[1], [0], [0], [1], [0, 0, 1, 1], [], []>} : vector<32x256xf32>, vector<256x256xf32>, vector<32x256xf32> -> vector<32x256xf32>
    %15 = arith.addf %13, %14 : vector<32x256xf32>
    %cst_17 = arith.constant dense<0.000000e+00> : vector<32x256xf32>
    %16 = tpu.matmul %6, %12, %cst_17 {dimension_numbers = #tpu.dot_dimension_numbers<[1], [0], [0], [1], [0, 0, 1, 1], [], []>} : vector<32x256xf32>, vector<256x256xf32>, vector<32x256xf32> -> vector<32x256xf32>
    %17 = arith.addf %15, %16 : vector<32x256xf32>
    %c0_18 = arith.constant 0 : index
    %c0_19 = arith.constant 0 : index
    %18 = vector.load %arg4[%c0_18, %c0_19] : memref<1x256xf32, #tpu.memory_space<vmem>>, vector<1x256xf32>
    %19 = vector.broadcast %18 : vector<1x256xf32> to vector<32x256xf32>
    %20 = arith.addf %17, %19 : vector<32x256xf32>
    %c0_20 = arith.constant 0 : index
    %c0_21 = arith.constant 0 : index
    %21 = vector.load %arg5[%c0_20, %c0_21] : memref<32x256xf32, #tpu.memory_space<vmem>>, vector<32x256xf32>
    tpu.vector_store %arg5[%c0_20, %c0_21], %20 {strides = array<i32>} : memref<32x256xf32, #tpu.memory_space<vmem>>, vector<32x256xf32>,
    return
  }
  func.func @transform_0(%arg0: i32) -> (i32, i32) {
    %c0_i32 = arith.constant 0 : i32
    %c0_i32_0 = arith.constant 0 : i32
    %c0_i32_1 = arith.constant 0 : i32
    return %c0_i32, %c0_i32_0 : i32, i32
  }
  func.func @transform_1(%arg0: i32) -> (i32, i32, i32) {
    %c0_i32 = arith.constant 0 : i32
    %c0_i32_0 = arith.constant 0 : i32
    %c0_i32_1 = arith.constant 0 : i32
    %c0_i32_2 = arith.constant 0 : i32
    return %c0_i32, %c0_i32_0, %c0_i32_1 : i32, i32, i32
  }
  func.func @transform_2(%arg0: i32) -> (i32, i32, i32) {
    %c0_i32 = arith.constant 0 : i32
    %c0_i32_0 = arith.constant 0 : i32
    %c0_i32_1 = arith.constant 0 : i32
    %c0_i32_2 = arith.constant 0 : i32
    return %c0_i32, %c0_i32_0, %c0_i32_1 : i32, i32, i32
  }
  func.func @transform_3(%arg0: i32) -> (i32, i32) {
    %c0_i32 = arith.constant 0 : i32
    %c0_i32_0 = arith.constant 0 : i32
    %c0_i32_1 = arith.constant 0 : i32
    return %c0_i32, %c0_i32_0 : i32, i32
  }
  func.func @transform_4(%arg0: i32) -> (i32, i32) {
    %c0_i32 = arith.constant 0 : i32
    %c0_i32_0 = arith.constant 0 : i32
    %c0_i32_1 = arith.constant 0 : i32
    return %c0_i32, %c0_i32_0 : i32, i32
  }
}

</mosaic_0001>

<llo_original>
// kernel: tile.8
$region0: #{tile.8}
  #allocation0 [shape = 's32[1]{0}', space=sflag, size = 0x4, scoped, tag = 'scoped memory for tile.8']
  %s0 = inlined_call_operand.vmem [shape: f32[16], index: 0, kind: input, shape index: {}]
  %s1 = inlined_call_operand.vmem [shape: f32[16,16], index: 1, kind: output, shape index: {}]
  // Predicated region
  $region2: #{tile.8} parent=0 // pred_check
    _
  $region3: #{tile.8} parent=0 // pred_check_branch
    %3 = sbr.rel (0) target = $region5
  $region4: #{tile.8} parent=0 // pred_region
    _
  $region5: #{tile.8} parent=0 // pred_fallthru
    _
  %v4 = vld [vmem:[%s0] ss:$0 sm:$0xff]
  %5 = vst [vmem:[%s1] sm:$0xff] %v4
  %s6 = scalar_lea.vmem %s1, 8
  %7 = vst [vmem:[%s6] sm:$0xff] %v4

// kernel: tile.9
$region0: #{tile.9}
  %s0 = inlined_call_operand.vmem [shape: f32[16,16], index: 0, kind: input, shape index: {}]
  %s1 = inlined_call_operand.vmem [shape: f32[1,256], index: 1, kind: output, shape index: {}]
  $region1: #{tile.9} parent=0
    #allocation0 [shape = 'u8[8192]{0}', space=vmem, size = 0x2000, scoped, tag = 'scoped mem for output reshape']
    %s2 = smov 3
    %v3 = vld [vmem:[%s0] ss:$8 sm:%s2]
    %vm4 = vcmask 130048
    %5 = vst.msk [vmem:[#allocation0] ss:$8 sm:$0x3] %vm4, %v3
    %s6 = scalar_lea.vmem %s0, 7
    %s7 = smov 3
    %v8 = vld [vmem:[%s6] ss:$8 sm:%s7]
    %9 = vrot.lane.b32.xlu0 %v8, 112
    %v10 = vpop.permute.xlu0 %9
    %vm11 = vcmask 1048448
    %12 = vst.msk [vmem:[#allocation0] ss:$8 sm:$0x3] %vm11, %v10
    %s13 = scalar_lea.vmem %s0, 6
    %s14 = smov 3
    %v15 = vld [vmem:[%s13] ss:$8 sm:%s14]
    %16 = vrot.lane.b32.xlu0 %v15, 96
    %v17 = vpop.permute.xlu0 %16
    %vm18 = vcmask 917248
    %19 = vst.msk [vmem:[#allocation0] ss:$8 sm:$0x3] %vm18, %v17
    %s20 = scalar_lea.vmem %s0, 5
    %s21 = smov 3
    %v22 = vld [vmem:[%s20] ss:$8 sm:%s21]
    %23 = vrot.lane.b32.xlu0 %v22, 80
    %v24 = vpop.permute.xlu0 %23
    %vm25 = vcmask 786048
    %26 = vst.msk [vmem:[#allocation0] ss:$8 sm:$0x3] %vm25, %v24
    %s27 = scalar_lea.vmem %s0, 4
    %s28 = smov 3
    %v29 = vld [vmem:[%s27] ss:$8 sm:%s28]
    %30 = vrot.lane.b32.xlu0 %v29, 64
    %v31 = vpop.permute.xlu0 %30
    %vm32 = vcmask 654848
    %33 = vst.msk [vmem:[#allocation0] ss:$8 sm:$0x3] %vm32, %v31
    %s34 = scalar_lea.vmem %s0, 3
    %s35 = smov 3
    %v36 = vld [vmem:[%s34] ss:$8 sm:%s35]
    %37 = vrot.lane.b32.xlu0 %v36, 48
    %v38 = vpop.permute.xlu0 %37
    %vm39 = vcmask 523648
    %40 = vst.msk [vmem:[#allocation0] ss:$8 sm:$0x3] %vm39, %v38
    %s41 = scalar_lea.vmem %s0, 2
    %s42 = smov 3
    %v43 = vld [vmem:[%s41] ss:$8 sm:%s42]
    %44 = vrot.lane.b32.xlu0 %v43, 32
    %v45 = vpop.permute.xlu0 %44
    %vm46 = vcmask 392448
    %47 = vst.msk [vmem:[#allocation0] ss:$8 sm:$0x3] %vm46, %v45
    %s48 = scalar_lea.vmem %s0, 1
    %s49 = smov 3
    %v50 = vld [vmem:[%s48] ss:$8 sm:%s49]
    %51 = vrot.lane.b32.xlu0 %v50, 16
    %v52 = vpop.permute.xlu0 %51
    %vm53 = vcmask 261248
    %54 = vst.msk [vmem:[#allocation0] ss:$8 sm:$0x3] %vm53, %v52
    %s56 = ssub.s32 2, 1
    %v57 = vld [vmem:[#allocation0] sm:%s56]
    %s59 = ssub.s32 2, 1
    %60 = vst [vmem:[%s1] sm:%s59] %v57
    %s61 = scalar_lea.vmem [#allocation0], 8
    %v62 = vld [vmem:[%s61] sm:%s56]
    %s64 = ssub.s32 2, 1
    %s65 = scalar_lea.vmem %s1, 1
    %66 = vst [vmem:[%s65] sm:%s64] %v62

// kernel: repconv_forward.1
$region0: #{repconv_forward.1}
  #allocation0 [shape = 'u32[]', space=smem, size = 0x4, offset = 0x4, fixed_abs, tag = 'smem constant byte address 0x4 - core index']
  #allocation1 [shape = 'u32[72,128]{1,0:T(1,128)}', space=vmem, size = 0x9000, scoped, tag = 'internal scratch']
  %s0 = inlined_call_operand.vmem [shape: f32[32,256], index: 0, kind: input, shape index: {}]
  %s1 = inlined_call_operand.vmem [shape: f32[3,256,256], index: 1, kind: input, shape index: {}]
  %s2 = inlined_call_operand.vmem [shape: f32[2,32,32], index: 2, kind: input, shape index: {}]
  %s3 = inlined_call_operand.vmem [shape: f32[1,256], index: 3, kind: input, shape index: {}]
  %s4 = inlined_call_operand.vmem [shape: f32[32,256], index: 4, kind: output, shape index: {}]
  %s5 = sld [smem:[#allocation0]]
  $region26: #{repconv_forward.1} parent=0
    _
  %s7 = ssub.s32 1, %s5
  %s8 = scalar_select 0, %s7, %s5
  // Predicated region
  $region2: #{repconv_forward.1} parent=0 // pred_check
    _
  $region3: #{repconv_forward.1} parent=0 // pred_check_branch
    %10 = sbr.rel (0) target = $region5
  $region4: #{repconv_forward.1} parent=0 // pred_region
    _
  $region5: #{repconv_forward.1} parent=0 // pred_fallthru
    _
  // Predicated region
  $region6: #{repconv_forward.1} parent=0 // pred_check
    _
  $region7: #{repconv_forward.1} parent=0 // pred_check_branch
    %12 = sbr.rel (0) target = $region9
  $region8: #{repconv_forward.1} parent=0 // pred_region
    _
  $region9: #{repconv_forward.1} parent=0 // pred_fallthru
    _
  // Predicated region
  $region10: #{repconv_forward.1} parent=0 // pred_check
    _
  $region11: #{repconv_forward.1} parent=0 // pred_check_branch
    %14 = sbr.rel (0) target = $region13
  $region12: #{repconv_forward.1} parent=0 // pred_region
    _
  $region13: #{repconv_forward.1} parent=0 // pred_fallthru
    _
  // Predicated region
  $region14: #{repconv_forward.1} parent=0 // pred_check
    _
  $region15: #{repconv_forward.1} parent=0 // pred_check_branch
    %16 = sbr.rel (0) target = $region17
  $region16: #{repconv_forward.1} parent=0 // pred_region
    _
  $region17: #{repconv_forward.1} parent=0 // pred_fallthru
    _
  %v17 = vld [vmem:[%s0] sm:$0xff]
  %v18 = vld [vmem:[%s0 + $0x8] sm:$0xff]
  %v19 = vld [vmem:[%s0 + $0x10] sm:$0xff]
  %v20 = vld [vmem:[%s0 + $0x18] sm:$0xff]
  %v21 = vld [vmem:[%s0 + $0x20] sm:$0xff]
  %v22 = vld [vmem:[%s0 + $0x28] sm:$0xff]
  %v23 = vld [vmem:[%s0 + $0x30] sm:$0xff]
  %v24 = vld [vmem:[%s0 + $0x38] sm:$0xff]
  %v25 = vld [vmem:[%s2] sm:$0xff]
  %v26 = vld [vmem:[%s2 + $0x8] sm:$0xff]
  %v27 = vld [vmem:[%s2 + $0x10] sm:$0xff]
  %v28 = vld [vmem:[%s2 + $0x18] sm:$0xff]
  %s29 = scalar_lea.vmem %s2, 32
  %v30 = vld [vmem:[%s29] sm:$0xff]
  %v31 = vld [vmem:[%s29 + $0x8] sm:$0xff]
  %v32 = vld [vmem:[%s29 + $0x10] sm:$0xff]
  %v33 = vld [vmem:[%s29 + $0x18] sm:$0xff]
  %vm34 = vcmask 261120
  %v36 = vsel %vm34, %v25, 0
  %v39 = vsel %vm34, %v26, 0
  %v42 = vsel %vm34, %v27, 0
  %v45 = vsel %vm34, %v28, 0
  %47 = vmatpush.msra.mxu0 0.0
  %48 = vmatpush.msra.mxu0 0.0
  %49 = vmatpush.msra.mxu0 0.0
  %50 = vmatpush.msra.mxu0 0.0
  %51 = vmatpush.msra.mxu0 0.0
  %52 = vmatpush.msra.mxu0 0.0
  %53 = vmatpush.msra.mxu0 0.0
  %54 = vmatpush.msra.mxu0 0.0
  %55 = vmatpush.msra.mxu0 0.0
  %56 = vmatpush.msra.mxu0 0.0
  %57 = vmatpush.msra.mxu0 0.0
  %58 = vmatpush.msra.mxu0 0.0
  %59 = vmatpush.msra.mxu0 %v23
  %60 = vmatpush.msra.mxu0 %v21
  %61 = vmatpush.msra.mxu0 %v19
  %62 = vmatpush.msra.mxu0 %v17
  %63 = vmatmul.f32.gmra.mxu0 %v36
  %v64 = vpop.f32.mrf.mxu0
  %v65 = vadd.f32 0.0, %v64
  %66 = vmatmul.f32.gmra.mxu0 %v39
  %v67 = vpop.f32.mrf.mxu0
  %v68 = vadd.f32 0.0, %v67
  %69 = vmatmul.f32.gmra.mxu0 %v42
  %v70 = vpop.f32.mrf.mxu0
  %v71 = vadd.f32 0.0, %v70
  %72 = vmatmul.f32.gmra.mxu0 %v45
  %v73 = vpop.f32.mrf.mxu0
  %v74 = vadd.f32 0.0, %v73
  %75 = vdwg.mxu0
  %76 = vmatpush.msra.mxu0 0.0
  %77 = vmatpush.msra.mxu0 0.0
  %78 = vmatpush.msra.mxu0 0.0
  %79 = vmatpush.msra.mxu0 0.0
  %80 = vmatpush.msra.mxu0 0.0
  %81 = vmatpush.msra.mxu0 0.0
  %82 = vmatpush.msra.mxu0 0.0
  %83 = vmatpush.msra.mxu0 0.0
  %84 = vmatpush.msra.mxu0 0.0
  %85 = vmatpush.msra.mxu0 0.0
  %86 = vmatpush.msra.mxu0 0.0
  %87 = vmatpush.msra.mxu0 0.0
  %88 = vmatpush.msra.mxu0 %v24
  %89 = vmatpush.msra.mxu0 %v22
  %90 = vmatpush.msra.mxu0 %v20
  %91 = vmatpush.msra.mxu0 %v18
  %92 = vmatmul.f32.gmra.mxu0 %v36
  %v93 = vpop.f32.mrf.mxu0
  %v94 = vadd.f32 0.0, %v93
  %95 = vmatmul.f32.gmra.mxu0 %v39
  %v96 = vpop.f32.mrf.mxu0
  %v97 = vadd.f32 0.0, %v96
  %98 = vmatmul.f32.gmra.mxu0 %v42
  %v99 = vpop.f32.mrf.mxu0
  %v100 = vadd.f32 0.0, %v99
  %101 = vmatmul.f32.gmra.mxu0 %v45
  %v102 = vpop.f32.mrf.mxu0
  %v103 = vadd.f32 0.0, %v102
  %104 = vdwg.mxu0
  %v106 = vsel %vm34, %v30, 0
  %v109 = vsel %vm34, %v31, 0
  %v112 = vsel %vm34, %v32, 0
  %v115 = vsel %vm34, %v33, 0
  %117 = vmatpush.msra.mxu0 0.0
  %118 = vmatpush.msra.mxu0 0.0
  %119 = vmatpush.msra.mxu0 0.0
  %120 = vmatpush.msra.mxu0 0.0
  %121 = vmatpush.msra.mxu0 0.0
  %122 = vmatpush.msra.mxu0 0.0
  %123 = vmatpush.msra.mxu0 0.0
  %124 = vmatpush.msra.mxu0 0.0
  %125 = vmatpush.msra.mxu0 0.0
  %126 = vmatpush.msra.mxu0 0.0
  %127 = vmatpush.msra.mxu0 0.0
  %128 = vmatpush.msra.mxu0 0.0
  %129 = vmatpush.msra.mxu0 %v23
  %130 = vmatpush.msra.mxu0 %v21
  %131 = vmatpush.msra.mxu0 %v19
  %132 = vmatpush.msra.mxu0 %v17
  %133 = vmatmul.f32.gmra.mxu0 %v106
  %v134 = vpop.f32.mrf.mxu0
  %v135 = vadd.f32 0.0, %v134
  %136 = vmatmul.f32.gmra.mxu0 %v109
  %v137 = vpop.f32.mrf.mxu0
  %v138 = vadd.f32 0.0, %v137
  %139 = vmatmul.f32.gmra.mxu0 %v112
  %v140 = vpop.f32.mrf.mxu0
  %v141 = vadd.f32 0.0, %v140
  %142 = vmatmul.f32.gmra.mxu0 %v115
  %v143 = vpop.f32.mrf.mxu0
  %v144 = vadd.f32 0.0, %v143
  %145 = vdwg.mxu0
  %146 = vmatpush.msra.mxu0 0.0
  %147 = vmatpush.msra.mxu0 0.0
  %148 = vmatpush.msra.mxu0 0.0
  %149 = vmatpush.msra.mxu0 0.0
  %150 = vmatpush.msra.mxu0 0.0
  %151 = vmatpush.msra.mxu0 0.0
  %152 = vmatpush.msra.mxu0 0.0
  %153 = vmatpush.msra.mxu0 0.0
  %154 = vmatpush.msra.mxu0 0.0
  %155 = vmatpush.msra.mxu0 0.0
  %156 = vmatpush.msra.mxu0 0.0
  %157 = vmatpush.msra.mxu0 0.0
  %158 = vmatpush.msra.mxu0 %v24
  %159 = vmatpush.msra.mxu0 %v22
  %160 = vmatpush.msra.mxu0 %v20
  %161 = vmatpush.msra.mxu0 %v18
  %162 = vmatmul.f32.gmra.mxu0 %v106
  %v163 = vpop.f32.mrf.mxu0
  %v164 = vadd.f32 0.0, %v163
  %165 = vmatmul.f32.gmra.mxu0 %v109
  %v166 = vpop.f32.mrf.mxu0
  %v167 = vadd.f32 0.0, %v166
  %168 = vmatmul.f32.gmra.mxu0 %v112
  %v169 = vpop.f32.mrf.mxu0
  %v170 = vadd.f32 0.0, %v169
  %171 = vmatmul.f32.gmra.mxu0 %v115
  %v172 = vpop.f32.mrf.mxu0
  %v173 = vadd.f32 0.0, %v172
  %174 = vdwg.mxu0
  %v175 = vld [vmem:[%s1] sm:$0xff]
  %v176 = vld [vmem:[%s1 + $0x8] sm:$0xff]
  %v177 = vld [vmem:[%s1 + $0x10] sm:$0xff]
  %v178 = vld [vmem:[%s1 + $0x18] sm:$0xff]
  %v179 = vld [vmem:[%s1 + $0x20] sm:$0xff]
  %v180 = vld [vmem:[%s1 + $0x28] sm:$0xff]
  %v181 = vld [vmem:[%s1 + $0x30] sm:$0xff]
  %v182 = vld [vmem:[%s1 + $0x38] sm:$0xff]
  %v183 = vld [vmem:[%s1 + $0x40] sm:$0xff]
  %v184 = vld [vmem:[%s1 + $0x48] sm:$0xff]
  %v185 = vld [vmem:[%s1 + $0x50] sm:$0xff]
  %v186 = vld [vmem:[%s1 + $0x58] sm:$0xff]
  %v187 = vld [vmem:[%s1 + $0x60] sm:$0xff]
  %v188 = vld [vmem:[%s1 + $0x68] sm:$0xff]
  %v189 = vld [vmem:[%s1 + $0x70] sm:$0xff]
  %v190 = vld [vmem:[%s1 + $0x78] sm:$0xff]
  %v191 = vld [vmem:[%s1 + $0x80] sm:$0xff]
  %v192 = vld [vmem:[%s1 + $0x88] sm:$0xff]
  %v193 = vld [vmem:[%s1 + $0x90] sm:$0xff]
  %v194 = vld [vmem:[%s1 + $0x98] sm:$0xff]
  %v195 = vld [vmem:[%s1 + $0xa0] sm:$0xff]
  %v196 = vld [vmem:[%s1 + $0xa8] sm:$0xff]
  %v197 = vld [vmem:[%s1 + $0xb0] sm:$0xff]
  %v198 = vld [vmem:[%s1 + $0xb8] sm:$0xff]
  %v199 = vld [vmem:[%s1 + $0xc0] sm:$0xff]
  %v200 = vld [vmem:[%s1 + $0xc8] sm:$0xff]
  %v201 = vld [vmem:[%s1 + $0xd0] sm:$0xff]
  %v202 = vld [vmem:[%s1 + $0xd8] sm:$0xff]
  %v203 = vld [vmem:[%s1 + $0xe0] sm:$0xff]
  %v204 = vld [vmem:[%s1 + $0xe8] sm:$0xff]
  %v205 = vld [vmem:[%s1 + $0xf0] sm:$0xff]
  %v206 = vld [vmem:[%s1 + $0xf8] sm:$0xff]
  %v207 = vld [vmem:[%s1 + $0x100] sm:$0xff]
  %v208 = vld [vmem:[%s1 + $0x108] sm:$0xff]
  %v209 = vld [vmem:[%s1 + $0x110] sm:$0xff]
  %v210 = vld [vmem:[%s1 + $0x118] sm:$0xff]
  %v211 = vld [vmem:[%s1 + $0x120] sm:$0xff]
  %v212 = vld [vmem:[%s1 + $0x128] sm:$0xff]
  %v213 = vld [vmem:[%s1 + $0x130] sm:$0xff]
  %v214 = vld [vmem:[%s1 + $0x138] sm:$0xff]
  %v215 = vld [vmem:[%s1 + $0x140] sm:$0xff]
  %v216 = vld [vmem:[%s1 + $0x148] sm:$0xff]
  %v217 = vld [vmem:[%s1 + $0x150] sm:$0xff]
  %v218 = vld [vmem:[%s1 + $0x158] sm:$0xff]
  %v219 = vld [vmem:[%s1 + $0x160] sm:$0xff]
  %v220 = vld [vmem:[%s1 + $0x168] sm:$0xff]
  %v221 = vld [vmem:[%s1 + $0x170] sm:$0xff]
  %v222 = vld [vmem:[%s1 + $0x178] sm:$0xff]
  %v223 = vld [vmem:[%s1 + $0x180] sm:$0xff]
  %v224 = vld [vmem:[%s1 + $0x188] sm:$0xff]
  %v225 = vld [vmem:[%s1 + $0x190] sm:$0xff]
  %v226 = vld [vmem:[%s1 + $0x198] sm:$0xff]
  %v227 = vld [vmem:[%s1 + $0x1a0] sm:$0xff]
  %v228 = vld [vmem:[%s1 + $0x1a8] sm:$0xff]
  %v229 = vld [vmem:[%s1 + $0x1b0] sm:$0xff]
  %v230 = vld [vmem:[%s1 + $0x1b8] sm:$0xff]
  %v231 = vld [vmem:[%s1 + $0x1c0] sm:$0xff]
  %v232 = vld [vmem:[%s1 + $0x1c8] sm:$0xff]
  %v233 = vld [vmem:[%s1 + $0x1d0] sm:$0xff]
  %v234 = vld [vmem:[%s1 + $0x1d8] sm:$0xff]
  %v235 = vld [vmem:[%s1 + $0x1e0] sm:$0xff]
  %v236 = vld [vmem:[%s1 + $0x1e8] sm:$0xff]
  %v237 = vld [vmem:[%s1 + $0x1f0] sm:$0xff]
  %v238 = vld [vmem:[%s1 + $0x1f8] sm:$0xff]
  %s239 = scalar_lea.vmem %s1, 512
  %v240 = vld [vmem:[%s239] sm:$0xff]
  %v241 = vld [vmem:[%s239 + $0x8] sm:$0xff]
  %v242 = vld [vmem:[%s239 + $0x10] sm:$0xff]
  %v243 = vld [vmem:[%s239 + $0x18] sm:$0xff]
  %v244 = vld [vmem:[%s239 + $0x20] sm:$0xff]
  %v245 = vld [vmem:[%s239 + $0x28] sm:$0xff]
  %v246 = vld [vmem:[%s239 + $0x30] sm:$0xff]
  %v247 = vld [vmem:[%s239 + $0x38] sm:$0xff]
  %v248 = vld [vmem:[%s239 + $0x40] sm:$0xff]
  %v249 = vld [vmem:[%s239 + $0x48] sm:$0xff]
  %v250 = vld [vmem:[%s239 + $0x50] sm:$0xff]
  %v251 = vld [vmem:[%s239 + $0x58] sm:$0xff]
  %v252 = vld [vmem:[%s239 + $0x60] sm:$0xff]
  %v253 = vld [vmem:[%s239 + $0x68] sm:$0xff]
  %v254 = vld [vmem:[%s239 + $0x70] sm:$0xff]
  %v255 = vld [vmem:[%s239 + $0x78] sm:$0xff]
  %v256 = vld [vmem:[%s239 + $0x80] sm:$0xff]
  %v257 = vld [vmem:[%s239 + $0x88] sm:$0xff]
  %v258 = vld [vmem:[%s239 + $0x90] sm:$0xff]
  %v259 = vld [vmem:[%s239 + $0x98] sm:$0xff]
  %v260 = vld [vmem:[%s239 + $0xa0] sm:$0xff]
  %v261 = vld [vmem:[%s239 + $0xa8] sm:$0xff]
  %v262 = vld [vmem:[%s239 + $0xb0] sm:$0xff]
  %v263 = vld [vmem:[%s239 + $0xb8] sm:$0xff]
  %v264 = vld [vmem:[%s239 + $0xc0] sm:$0xff]
  %v265 = vld [vmem:[%s239 + $0xc8] sm:$0xff]
  %v266 = vld [vmem:[%s239 + $0xd0] sm:$0xff]
  %v267 = vld [vmem:[%s239 + $0xd8] sm:$0xff]
  %v268 = vld [vmem:[%s239 + $0xe0] sm:$0xff]
  %v269 = vld [vmem:[%s239 + $0xe8] sm:$0xff]
  %v270 = vld [vmem:[%s239 + $0xf0] sm:$0xff]
  %v271 = vld [vmem:[%s239 + $0xf8] sm:$0xff]
  %v272 = vld [vmem:[%s239 + $0x100] sm:$0xff]
  %v273 = vld [vmem:[%s239 + $0x108] sm:$0xff]
  %v274 = vld [vmem:[%s239 + $0x110] sm:$0xff]
  %v275 = vld [vmem:[%s239 + $0x118] sm:$0xff]
  %v276 = vld [vmem:[%s239 + $0x120] sm:$0xff]
  %v277 = vld [vmem:[%s239 + $0x128] sm:$0xff]
  %v278 = vld [vmem:[%s239 + $0x130] sm:$0xff]
  %v279 = vld [vmem:[%s239 + $0x138] sm:$0xff]
  %v280 = vld [vmem:[%s239 + $0x140] sm:$0xff]
  %v281 = vld [vmem:[%s239 + $0x148] sm:$0xff]
  %v282 = vld [vmem:[%s239 + $0x150] sm:$0xff]
  %v283 = vld [vmem:[%s239 + $0x158] sm:$0xff]
  %v284 = vld [vmem:[%s239 + $0x160] sm:$0xff]
  %v285 = vld [vmem:[%s239 + $0x168] sm:$0xff]
  %v286 = vld [vmem:[%s239 + $0x170] sm:$0xff]
  %v287 = vld [vmem:[%s239 + $0x178] sm:$0xff]
  %v288 = vld [vmem:[%s239 + $0x180] sm:$0xff]
  %v289 = vld [vmem:[%s239 + $0x188] sm:$0xff]
  %v290 = vld [vmem:[%s239 + $0x190] sm:$0xff]
  %v291 = vld [vmem:[%s239 + $0x198] sm:$0xff]
  %v292 = vld [vmem:[%s239 + $0x1a0] sm:$0xff]
  %v293 = vld [vmem:[%s239 + $0x1a8] sm:$0xff]
  %v294 = vld [vmem:[%s239 + $0x1b0] sm:$0xff]
  %v295 = vld [vmem:[%s239 + $0x1b8] sm:$0xff]
  %v296 = vld [vmem:[%s239 + $0x1c0] sm:$0xff]
  %v297 = vld [vmem:[%s239 + $0x1c8] sm:$0xff]
  %v298 = vld [vmem:[%s239 + $0x1d0] sm:$0xff]
  %v299 = vld [vmem:[%s239 + $0x1d8] sm:$0xff]
  %v300 = vld [vmem:[%s239 + $0x1e0] sm:$0xff]
  %v301 = vld [vmem:[%s239 + $0x1e8] sm:$0xff]
  %v302 = vld [vmem:[%s239 + $0x1f0] sm:$0xff]
  %v303 = vld [vmem:[%s239 + $0x1f8] sm:$0xff]
  %s304 = scalar_lea.vmem %s1, 1024
  %v305 = vld [vmem:[%s304] sm:$0xff]
  %v306 = vld [vmem:[%s304 + $0x8] sm:$0xff]
  %v307 = vld [vmem:[%s304 + $0x10] sm:$0xff]
  %v308 = vld [vmem:[%s304 + $0x18] sm:$0xff]
  %v309 = vld [vmem:[%s304 + $0x20] sm:$0xff]
  %v310 = vld [vmem:[%s304 + $0x28] sm:$0xff]
  %v311 = vld [vmem:[%s304 + $0x30] sm:$0xff]
  %v312 = vld [vmem:[%s304 + $0x38] sm:$0xff]
  %v313 = vld [vmem:[%s304 + $0x40] sm:$0xff]
  %v314 = vld [vmem:[%s304 + $0x48] sm:$0xff]
  %v315 = vld [vmem:[%s304 + $0x50] sm:$0xff]
  %v316 = vld [vmem:[%s304 + $0x58] sm:$0xff]
  %v317 = vld [vmem:[%s304 + $0x60] sm:$0xff]
  %v318 = vld [vmem:[%s304 + $0x68] sm:$0xff]
  %v319 = vld [vmem:[%s304 + $0x70] sm:$0xff]
  %v320 = vld [vmem:[%s304 + $0x78] sm:$0xff]
  %v321 = vld [vmem:[%s304 + $0x80] sm:$0xff]
  %v322 = vld [vmem:[%s304 + $0x88] sm:$0xff]
  %v323 = vld [vmem:[%s304 + $0x90] sm:$0xff]
  %v324 = vld [vmem:[%s304 + $0x98] sm:$0xff]
  %v325 = vld [vmem:[%s304 + $0xa0] sm:$0xff]
  %v326 = vld [vmem:[%s304 + $0xa8] sm:$0xff]
  %v327 = vld [vmem:[%s304 + $0xb0] sm:$0xff]
  %v328 = vld [vmem:[%s304 + $0xb8] sm:$0xff]
  %v329 = vld [vmem:[%s304 + $0xc0] sm:$0xff]
  %v330 = vld [vmem:[%s304 + $0xc8] sm:$0xff]
  %v331 = vld [vmem:[%s304 + $0xd0] sm:$0xff]
  %v332 = vld [vmem:[%s304 + $0xd8] sm:$0xff]
  %v333 = vld [vmem:[%s304 + $0xe0] sm:$0xff]
  %v334 = vld [vmem:[%s304 + $0xe8] sm:$0xff]
  %v335 = vld [vmem:[%s304 + $0xf0] sm:$0xff]
  %v336 = vld [vmem:[%s304 + $0xf8] sm:$0xff]
  %v337 = vld [vmem:[%s304 + $0x100] sm:$0xff]
  %v338 = vld [vmem:[%s304 + $0x108] sm:$0xff]
  %v339 = vld [vmem:[%s304 + $0x110] sm:$0xff]
  %v340 = vld [vmem:[%s304 + $0x118] sm:$0xff]
  %v341 = vld [vmem:[%s304 + $0x120] sm:$0xff]
  %v342 = vld [vmem:[%s304 + $0x128] sm:$0xff]
  %v343 = vld [vmem:[%s304 + $0x130] sm:$0xff]
  %v344 = vld [vmem:[%s304 + $0x138] sm:$0xff]
  %v345 = vld [vmem:[%s304 + $0x140] sm:$0xff]
  %v346 = vld [vmem:[%s304 + $0x148] sm:$0xff]
  %v347 = vld [vmem:[%s304 + $0x150] sm:$0xff]
  %v348 = vld [vmem:[%s304 + $0x158] sm:$0xff]
  %v349 = vld [vmem:[%s304 + $0x160] sm:$0xff]
  %v350 = vld [vmem:[%s304 + $0x168] sm:$0xff]
  %v351 = vld [vmem:[%s304 + $0x170] sm:$0xff]
  %v352 = vld [vmem:[%s304 + $0x178] sm:$0xff]
  %v353 = vld [vmem:[%s304 + $0x180] sm:$0xff]
  %v354 = vld [vmem:[%s304 + $0x188] sm:$0xff]
  %v355 = vld [vmem:[%s304 + $0x190] sm:$0xff]
  %v356 = vld [vmem:[%s304 + $0x198] sm:$0xff]
  %v357 = vld [vmem:[%s304 + $0x1a0] sm:$0xff]
  %v358 = vld [vmem:[%s304 + $0x1a8] sm:$0xff]
  %v359 = vld [vmem:[%s304 + $0x1b0] sm:$0xff]
  %v360 = vld [vmem:[%s304 + $0x1b8] sm:$0xff]
  %v361 = vld [vmem:[%s304 + $0x1c0] sm:$0xff]
  %v362 = vld [vmem:[%s304 + $0x1c8] sm:$0xff]
  %v363 = vld [vmem:[%s304 + $0x1d0] sm:$0xff]
  %v364 = vld [vmem:[%s304 + $0x1d8] sm:$0xff]
  %v365 = vld [vmem:[%s304 + $0x1e0] sm:$0xff]
  %v366 = vld [vmem:[%s304 + $0x1e8] sm:$0xff]
  %v367 = vld [vmem:[%s304 + $0x1f0] sm:$0xff]
  %v368 = vld [vmem:[%s304 + $0x1f8] sm:$0xff]
  %369 = vmatpush.msra.mxu0 %v205
  %370 = vmatpush.msra.mxu0 %v203
  %371 = vmatpush.msra.mxu0 %v201
  %372 = vmatpush.msra.mxu0 %v199
  %373 = vmatpush.msra.mxu0 %v197
  %374 = vmatpush.msra.mxu0 %v195
  %375 = vmatpush.msra.mxu0 %v193
  %376 = vmatpush.msra.mxu0 %v191
  %377 = vmatpush.msra.mxu0 %v189
  %378 = vmatpush.msra.mxu0 %v187
  %379 = vmatpush.msra.mxu0 %v185
  %380 = vmatpush.msra.mxu0 %v183
  %381 = vmatpush.msra.mxu0 %v181
  %382 = vmatpush.msra.mxu0 %v179
  %383 = vmatpush.msra.mxu0 %v177
  %384 = vmatpush.msra.mxu0 %v175
  %385 = vmatmul.f32.gmra.mxu0 %v65
  %v386 = vpop.f32.mrf.mxu0
  %v387 = vadd.f32 0.0, %v386
  %388 = vmatmul.f32.gmra.mxu0 %v68
  %v389 = vpop.f32.mrf.mxu0
  %v390 = vadd.f32 0.0, %v389
  %391 = vmatmul.f32.gmra.mxu0 %v71
  %v392 = vpop.f32.mrf.mxu0
  %v393 = vadd.f32 0.0, %v392
  %394 = vmatmul.f32.gmra.mxu0 %v74
  %v395 = vpop.f32.mrf.mxu0
  %v396 = vadd.f32 0.0, %v395
  %397 = vdwg.mxu0
  %398 = vmatpush.msra.mxu0 %v237
  %399 = vmatpush.msra.mxu0 %v235
  %400 = vmatpush.msra.mxu0 %v233
  %401 = vmatpush.msra.mxu0 %v231
  %402 = vmatpush.msra.mxu0 %v229
  %403 = vmatpush.msra.mxu0 %v227
  %404 = vmatpush.msra.mxu0 %v225
  %405 = vmatpush.msra.mxu0 %v223
  %406 = vmatpush.msra.mxu0 %v221
  %407 = vmatpush.msra.mxu0 %v219
  %408 = vmatpush.msra.mxu0 %v217
  %409 = vmatpush.msra.mxu0 %v215
  %410 = vmatpush.msra.mxu0 %v213
  %411 = vmatpush.msra.mxu0 %v211
  %412 = vmatpush.msra.mxu0 %v209
  %413 = vmatpush.msra.mxu0 %v207
  %414 = vmatmul.f32.gmra.mxu0 %v94
  %v415 = vpop.f32.mrf.mxu0
  %v416 = vadd.f32 %v387, %v415
  %417 = vmatmul.f32.gmra.mxu0 %v97
  %v418 = vpop.f32.mrf.mxu0
  %v419 = vadd.f32 %v390, %v418
  %420 = vmatmul.f32.gmra.mxu0 %v100
  %v421 = vpop.f32.mrf.mxu0
  %v422 = vadd.f32 %v393, %v421
  %423 = vmatmul.f32.gmra.mxu0 %v103
  %v424 = vpop.f32.mrf.mxu0
  %v425 = vadd.f32 %v396, %v424
  %426 = vdwg.mxu0
  %427 = vmatpush.msra.mxu0 %v206
  %428 = vmatpush.msra.mxu0 %v204
  %429 = vmatpush.msra.mxu0 %v202
  %430 = vmatpush.msra.mxu0 %v200
  %431 = vmatpush.msra.mxu0 %v198
  %432 = vmatpush.msra.mxu0 %v196
  %433 = vmatpush.msra.mxu0 %v194
  %434 = vmatpush.msra.mxu0 %v192
  %435 = vmatpush.msra.mxu0 %v190
  %436 = vmatpush.msra.mxu0 %v188
  %437 = vmatpush.msra.mxu0 %v186
  %438 = vmatpush.msra.mxu0 %v184
  %439 = vmatpush.msra.mxu0 %v182
  %440 = vmatpush.msra.mxu0 %v180
  %441 = vmatpush.msra.mxu0 %v178
  %442 = vmatpush.msra.mxu0 %v176
  %443 = vmatmul.f32.gmra.mxu0 %v65
  %v444 = vpop.f32.mrf.mxu0
  %v445 = vadd.f32 0.0, %v444
  %446 = vmatmul.f32.gmra.mxu0 %v68
  %v447 = vpop.f32.mrf.mxu0
  %v448 = vadd.f32 0.0, %v447
  %449 = vmatmul.f32.gmra.mxu0 %v71
  %v450 = vpop.f32.mrf.mxu0
  %v451 = vadd.f32 0.0, %v450
  %452 = vmatmul.f32.gmra.mxu0 %v74
  %v453 = vpop.f32.mrf.mxu0
  %v454 = vadd.f32 0.0, %v453
  %455 = vdwg.mxu0
  %456 = vmatpush.msra.mxu0 %v238
  %457 = vmatpush.msra.mxu0 %v236
  %458 = vmatpush.msra.mxu0 %v234
  %459 = vmatpush.msra.mxu0 %v232
  %460 = vmatpush.msra.mxu0 %v230
  %461 = vmatpush.msra.mxu0 %v228
  %462 = vmatpush.msra.mxu0 %v226
  %463 = vmatpush.msra.mxu0 %v224
  %464 = vmatpush.msra.mxu0 %v222
  %465 = vmatpush.msra.mxu0 %v220
  %466 = vmatpush.msra.mxu0 %v218
  %467 = vmatpush.msra.mxu0 %v216
  %468 = vmatpush.msra.mxu0 %v214
  %469 = vmatpush.msra.mxu0 %v212
  %470 = vmatpush.msra.mxu0 %v210
  %471 = vmatpush.msra.mxu0 %v208
  %472 = vmatmul.f32.gmra.mxu0 %v94
  %v473 = vpop.f32.mrf.mxu0
  %v474 = vadd.f32 %v445, %v473
  %475 = vmatmul.f32.gmra.mxu0 %v97
  %v476 = vpop.f32.mrf.mxu0
  %v477 = vadd.f32 %v448, %v476
  %478 = vmatmul.f32.gmra.mxu0 %v100
  %v479 = vpop.f32.mrf.mxu0
  %v480 = vadd.f32 %v451, %v479
  %481 = vmatmul.f32.gmra.mxu0 %v103
  %v482 = vpop.f32.mrf.mxu0
  %v483 = vadd.f32 %v454, %v482
  %484 = vdwg.mxu0
  %485 = vmatpush.msra.mxu0 %v270
  %486 = vmatpush.msra.mxu0 %v268
  %487 = vmatpush.msra.mxu0 %v266
  %488 = vmatpush.msra.mxu0 %v264
  %489 = vmatpush.msra.mxu0 %v262
  %490 = vmatpush.msra.mxu0 %v260
  %491 = vmatpush.msra.mxu0 %v258
  %492 = vmatpush.msra.mxu0 %v256
  %493 = vmatpush.msra.mxu0 %v254
  %494 = vmatpush.msra.mxu0 %v252
  %495 = vmatpush.msra.mxu0 %v250
  %496 = vmatpush.msra.mxu0 %v248
  %497 = vmatpush.msra.mxu0 %v246
  %498 = vmatpush.msra.mxu0 %v244
  %499 = vmatpush.msra.mxu0 %v242
  %500 = vmatpush.msra.mxu0 %v240
  %501 = vmatmul.f32.gmra.mxu0 %v17
  %v502 = vpop.f32.mrf.mxu0
  %v503 = vadd.f32 %v416, %v502
  %504 = vmatmul.f32.gmra.mxu0 %v19
  %v505 = vpop.f32.mrf.mxu0
  %v506 = vadd.f32 %v419, %v505
  %507 = vmatmul.f32.gmra.mxu0 %v21
  %v508 = vpop.f32.mrf.mxu0
  %v509 = vadd.f32 %v422, %v508
  %510 = vmatmul.f32.gmra.mxu0 %v23
  %v511 = vpop.f32.mrf.mxu0
  %v512 = vadd.f32 %v425, %v511
  %513 = vdwg.mxu0
  %514 = vmatpush.msra.mxu0 %v302
  %515 = vmatpush.msra.mxu0 %v300
  %516 = vmatpush.msra.mxu0 %v298
  %517 = vmatpush.msra.mxu0 %v296
  %518 = vmatpush.msra.mxu0 %v294
  %519 = vmatpush.msra.mxu0 %v292
  %520 = vmatpush.msra.mxu0 %v290
  %521 = vmatpush.msra.mxu0 %v288
  %522 = vmatpush.msra.mxu0 %v286
  %523 = vmatpush.msra.mxu0 %v284
  %524 = vmatpush.msra.mxu0 %v282
  %525 = vmatpush.msra.mxu0 %v280
  %526 = vmatpush.msra.mxu0 %v278
  %527 = vmatpush.msra.mxu0 %v276
  %528 = vmatpush.msra.mxu0 %v274
  %529 = vmatpush.msra.mxu0 %v272
  %530 = vmatmul.f32.gmra.mxu0 %v18
  %v531 = vpop.f32.mrf.mxu0
  %v532 = vadd.f32 %v503, %v531
  %533 = vmatmul.f32.gmra.mxu0 %v20
  %v534 = vpop.f32.mrf.mxu0
  %v535 = vadd.f32 %v506, %v534
  %536 = vmatmul.f32.gmra.mxu0 %v22
  %v537 = vpop.f32.mrf.mxu0
  %v538 = vadd.f32 %v509, %v537
  %539 = vmatmul.f32.gmra.mxu0 %v24
  %v540 = vpop.f32.mrf.mxu0
  %v541 = vadd.f32 %v512, %v540
  %542 = vdwg.mxu0
  %543 = vmatpush.msra.mxu0 %v271
  %544 = vmatpush.msra.mxu0 %v269
  %545 = vmatpush.msra.mxu0 %v267
  %546 = vmatpush.msra.mxu0 %v265
  %547 = vmatpush.msra.mxu0 %v263
  %548 = vmatpush.msra.mxu0 %v261
  %549 = vmatpush.msra.mxu0 %v259
  %550 = vmatpush.msra.mxu0 %v257
  %551 = vmatpush.msra.mxu0 %v255
  %552 = vmatpush.msra.mxu0 %v253
  %553 = vmatpush.msra.mxu0 %v251
  %554 = vmatpush.msra.mxu0 %v249
  %555 = vmatpush.msra.mxu0 %v247
  %556 = vmatpush.msra.mxu0 %v245
  %557 = vmatpush.msra.mxu0 %v243
  %558 = vmatpush.msra.mxu0 %v241
  %559 = vmatmul.f32.gmra.mxu0 %v17
  %v560 = vpop.f32.mrf.mxu0
  %v561 = vadd.f32 %v474, %v560
  %562 = vmatmul.f32.gmra.mxu0 %v19
  %v563 = vpop.f32.mrf.mxu0
  %v564 = vadd.f32 %v477, %v563
  %565 = vmatmul.f32.gmra.mxu0 %v21
  %v566 = vpop.f32.mrf.mxu0
  %v567 = vadd.f32 %v480, %v566
  %568 = vmatmul.f32.gmra.mxu0 %v23
  %v569 = vpop.f32.mrf.mxu0
  %v570 = vadd.f32 %v483, %v569
  %571 = vdwg.mxu0
  %572 = vmatpush.msra.mxu0 %v303
  %573 = vmatpush.msra.mxu0 %v301
  %574 = vmatpush.msra.mxu0 %v299
  %575 = vmatpush.msra.mxu0 %v297
  %576 = vmatpush.msra.mxu0 %v295
  %577 = vmatpush.msra.mxu0 %v293
  %578 = vmatpush.msra.mxu0 %v291
  %579 = vmatpush.msra.mxu0 %v289
  %580 = vmatpush.msra.mxu0 %v287
  %581 = vmatpush.msra.mxu0 %v285
  %582 = vmatpush.msra.mxu0 %v283
  %583 = vmatpush.msra.mxu0 %v281
  %584 = vmatpush.msra.mxu0 %v279
  %585 = vmatpush.msra.mxu0 %v277
  %586 = vmatpush.msra.mxu0 %v275
  %587 = vmatpush.msra.mxu0 %v273
  %588 = vmatmul.f32.gmra.mxu0 %v18
  %v589 = vpop.f32.mrf.mxu0
  %v590 = vadd.f32 %v561, %v589
  %591 = vmatmul.f32.gmra.mxu0 %v20
  %v592 = vpop.f32.mrf.mxu0
  %v593 = vadd.f32 %v564, %v592
  %594 = vmatmul.f32.gmra.mxu0 %v22
  %v595 = vpop.f32.mrf.mxu0
  %v596 = vadd.f32 %v567, %v595
  %597 = vmatmul.f32.gmra.mxu0 %v24
  %v598 = vpop.f32.mrf.mxu0
  %v599 = vadd.f32 %v570, %v598
  %600 = vdwg.mxu0
  %601 = vmatpush.msra.mxu0 %v335
  %602 = vmatpush.msra.mxu0 %v333
  %603 = vmatpush.msra.mxu0 %v331
  %604 = vmatpush.msra.mxu0 %v329
  %605 = vmatpush.msra.mxu0 %v327
  %606 = vmatpush.msra.mxu0 %v325
  %607 = vmatpush.msra.mxu0 %v323
  %608 = vmatpush.msra.mxu0 %v321
  %609 = vmatpush.msra.mxu0 %v319
  %610 = vmatpush.msra.mxu0 %v317
  %611 = vmatpush.msra.mxu0 %v315
  %612 = vmatpush.msra.mxu0 %v313
  %613 = vmatpush.msra.mxu0 %v311
  %614 = vmatpush.msra.mxu0 %v309
  %615 = vmatpush.msra.mxu0 %v307
  %616 = vmatpush.msra.mxu0 %v305
  %617 = vmatmul.f32.gmra.mxu0 %v135
  %v618 = vpop.f32.mrf.mxu0
  %v619 = vadd.f32 0.0, %v618
  %620 = vmatmul.f32.gmra.mxu0 %v138
  %v621 = vpop.f32.mrf.mxu0
  %v622 = vadd.f32 0.0, %v621
  %623 = vmatmul.f32.gmra.mxu0 %v141
  %v624 = vpop.f32.mrf.mxu0
  %v625 = vadd.f32 0.0, %v624
  %626 = vmatmul.f32.gmra.mxu0 %v144
  %v627 = vpop.f32.mrf.mxu0
  %v628 = vadd.f32 0.0, %v627
  %629 = vdwg.mxu0
  %630 = vmatpush.msra.mxu0 %v367
  %631 = vmatpush.msra.mxu0 %v365
  %632 = vmatpush.msra.mxu0 %v363
  %633 = vmatpush.msra.mxu0 %v361
  %634 = vmatpush.msra.mxu0 %v359
  %635 = vmatpush.msra.mxu0 %v357
  %636 = vmatpush.msra.mxu0 %v355
  %637 = vmatpush.msra.mxu0 %v353
  %638 = vmatpush.msra.mxu0 %v351
  %639 = vmatpush.msra.mxu0 %v349
  %640 = vmatpush.msra.mxu0 %v347
  %641 = vmatpush.msra.mxu0 %v345
  %642 = vmatpush.msra.mxu0 %v343
  %643 = vmatpush.msra.mxu0 %v341
  %644 = vmatpush.msra.mxu0 %v339
  %645 = vmatpush.msra.mxu0 %v337
  %646 = vmatmul.f32.gmra.mxu0 %v164
  %v647 = vpop.f32.mrf.mxu0
  %v648 = vadd.f32 %v619, %v647
  %649 = vmatmul.f32.gmra.mxu0 %v167
  %v650 = vpop.f32.mrf.mxu0
  %v651 = vadd.f32 %v622, %v650
  %652 = vmatmul.f32.gmra.mxu0 %v170
  %v653 = vpop.f32.mrf.mxu0
  %v654 = vadd.f32 %v625, %v653
  %655 = vmatmul.f32.gmra.mxu0 %v173
  %v656 = vpop.f32.mrf.mxu0
  %v657 = vadd.f32 %v628, %v656
  %658 = vdwg.mxu0
  %659 = vmatpush.msra.mxu0 %v336
  %660 = vmatpush.msra.mxu0 %v334
  %661 = vmatpush.msra.mxu0 %v332
  %662 = vmatpush.msra.mxu0 %v330
  %663 = vmatpush.msra.mxu0 %v328
  %664 = vmatpush.msra.mxu0 %v326
  %665 = vmatpush.msra.mxu0 %v324
  %666 = vmatpush.msra.mxu0 %v322
  %667 = vmatpush.msra.mxu0 %v320
  %668 = vmatpush.msra.mxu0 %v318
  %669 = vmatpush.msra.mxu0 %v316
  %670 = vmatpush.msra.mxu0 %v314
  %671 = vmatpush.msra.mxu0 %v312
  %672 = vmatpush.msra.mxu0 %v310
  %673 = vmatpush.msra.mxu0 %v308
  %674 = vmatpush.msra.mxu0 %v306
  %675 = vmatmul.f32.gmra.mxu0 %v135
  %v676 = vpop.f32.mrf.mxu0
  %v677 = vadd.f32 0.0, %v676
  %678 = vmatmul.f32.gmra.mxu0 %v138
  %v679 = vpop.f32.mrf.mxu0
  %v680 = vadd.f32 0.0, %v679
  %681 = vmatmul.f32.gmra.mxu0 %v141
  %v682 = vpop.f32.mrf.mxu0
  %v683 = vadd.f32 0.0, %v682
  %684 = vmatmul.f32.gmra.mxu0 %v144
  %v685 = vpop.f32.mrf.mxu0
  %v686 = vadd.f32 0.0, %v685
  %687 = vdwg.mxu0
  %688 = vmatpush.msra.mxu0 %v368
  %689 = vmatpush.msra.mxu0 %v366
  %690 = vmatpush.msra.mxu0 %v364
  %691 = vmatpush.msra.mxu0 %v362
  %692 = vmatpush.msra.mxu0 %v360
  %693 = vmatpush.msra.mxu0 %v358
  %694 = vmatpush.msra.mxu0 %v356
  %695 = vmatpush.msra.mxu0 %v354
  %696 = vmatpush.msra.mxu0 %v352
  %697 = vmatpush.msra.mxu0 %v350
  %698 = vmatpush.msra.mxu0 %v348
  %699 = vmatpush.msra.mxu0 %v346
  %700 = vmatpush.msra.mxu0 %v344
  %701 = vmatpush.msra.mxu0 %v342
  %702 = vmatpush.msra.mxu0 %v340
  %703 = vmatpush.msra.mxu0 %v338
  %704 = vmatmul.f32.gmra.mxu0 %v164
  %v705 = vpop.f32.mrf.mxu0
  %v706 = vadd.f32 %v677, %v705
  %707 = vmatmul.f32.gmra.mxu0 %v167
  %v708 = vpop.f32.mrf.mxu0
  %v709 = vadd.f32 %v680, %v708
  %710 = vmatmul.f32.gmra.mxu0 %v170
  %v711 = vpop.f32.mrf.mxu0
  %v712 = vadd.f32 %v683, %v711
  %713 = vmatmul.f32.gmra.mxu0 %v173
  %v714 = vpop.f32.mrf.mxu0
  %v715 = vadd.f32 %v686, %v714
  %716 = vdwg.mxu0
  %v717 = vadd.f32 %v532, %v648
  %v718 = vadd.f32 %v590, %v706
  %v719 = vadd.f32 %v535, %v651
  %v720 = vadd.f32 %v593, %v709
  %v721 = vadd.f32 %v538, %v654
  %v722 = vadd.f32 %v596, %v712
  %v723 = vadd.f32 %v541, %v657
  %v724 = vadd.f32 %v599, %v715
  %v725 = vld [vmem:[%s3] sm:$0x3]
  %v727 = vperm.slane %v725, 0
  %v728 = vperm.slane %v725, 1
  %v731 = vadd.f32 %v717, %v727
  %v732 = vadd.f32 %v718, %v728
  %v733 = vadd.f32 %v719, %v727
  %v734 = vadd.f32 %v720, %v728
  %v735 = vadd.f32 %v721, %v727
  %v736 = vadd.f32 %v722, %v728
  %v737 = vadd.f32 %v723, %v727
  %v738 = vadd.f32 %v724, %v728
  %739 = vst [vmem:[%s4] sm:$0xff] %v731
  %740 = vst [vmem:[%s4 + $0x8] sm:$0xff] %v732
  %741 = vst [vmem:[%s4 + $0x10] sm:$0xff] %v733
  %742 = vst [vmem:[%s4 + $0x18] sm:$0xff] %v734
  %743 = vst [vmem:[%s4 + $0x20] sm:$0xff] %v735
  %744 = vst [vmem:[%s4 + $0x28] sm:$0xff] %v736
  %745 = vst [vmem:[%s4 + $0x30] sm:$0xff] %v737
  %746 = vst [vmem:[%s4 + $0x38] sm:$0xff] %v738
  // Predicated region
  $region18: #{repconv_forward.1} parent=0 // pred_check
    _
  $region19: #{repconv_forward.1} parent=0 // pred_check_branch
    %748 = sbr.rel (0) target = $region21
  $region20: #{repconv_forward.1} parent=0 // pred_region
    _
  $region21: #{repconv_forward.1} parent=0 // pred_fallthru
    _
  // Predicated region
  $region22: #{repconv_forward.1} parent=0 // pred_check
    _
  $region23: #{repconv_forward.1} parent=0 // pred_check_branch
    %750 = sbr.rel (0) target = $region25
  $region24: #{repconv_forward.1} parent=0 // pred_region
    _
  $region25: #{repconv_forward.1} parent=0 // pred_fallthru
    _

</llo_original>
